<compile_context>
chip_gen: v7x
topology: tpu7x:2x2x1
jax: 0.10.0
libtpu: 0.0.40
codegen_flags: <defaults>
</compile_context>

<pallas_src>
import functools

import jax
import jax.numpy as jnp
from jax import lax
from jax.experimental import pallas as pl
from jax.experimental.pallas import tpu as pltpu


def _round_up(x, m):
    return ((x + m - 1) // m) * m


def _mlm_head_kernel(x_ref, w1_ref, b1_ref, gamma_ref, beta_ref,
                     w2_ref, b2_ref, o_ref, hn_ref, *,
                     eps, matmul_dtype, approximate_gelu):
    # ---- dense + GELU + LayerNorm: once per row tile (vocab step 0 only) ---
    @pl.when(pl.program_id(1) == 0)
    def _():
        # dense: x @ W1 + b1   (W1 pre-transposed to (H, H) = weight.T)
        h = jnp.dot(x_ref[...], w1_ref[...],
                    preferred_element_type=jnp.float32)
        h = h + b1_ref[...].astype(jnp.float32)

        if approximate_gelu:
            # tanh-approx GELU: EUP tanh slot instead of the long erf VALU
            # polynomial.  Off by default (nn.GELU() is exact erf).
            c = jnp.float32(0.7978845608028654)          # sqrt(2/pi)
            h = 0.5 * h * (1.0 + jnp.tanh(c * (h + 0.044715 * h * h * h)))
        else:
            h = 0.5 * h * (1.0 + lax.erf(h * jnp.float32(0.7071067811865476)))

        # LayerNorm over last dim (biased variance), affine
        mean = jnp.mean(h, axis=-1, keepdims=True)
        centered = h - mean
        var = jnp.mean(centered * centered, axis=-1, keepdims=True)
        hn = centered * lax.rsqrt(var + jnp.float32(eps))
        hn = (hn * gamma_ref[...].astype(jnp.float32)
              + beta_ref[...].astype(jnp.float32))

        hn_ref[...] = hn.astype(hn_ref.dtype)

    # ---- decoder: streamed over vocab tiles (every (i, j)) -----------------
    w2t = w2_ref[...]
    if w2t.dtype != matmul_dtype:
        w2t = w2t.astype(matmul_dtype)
    out = jnp.dot(hn_ref[...], w2t, preferred_element_type=jnp.float32)
    out = out + b2_ref[...].astype(jnp.float32)
    o_ref[...] = out.astype(o_ref.dtype)


def pad_decoder_params(w2, b2, tv=2048):
    """Pad the decoder weight/bias ONCE at parameter-load time so the per-call
    wrapper never copies the ~H*V decoder weight in HBM.  w2: (H, V), b2: (V,).
    Pass the true vocab size as `vocab_size=` to roberta_mlm_head afterwards."""
    V = w2.shape[1]
    v_p = _round_up(V, max(int(tv), 128))
    if v_p != V:
        w2 = jnp.pad(w2, ((0, 0), (0, v_p - V)))
        b2 = jnp.pad(b2, ((0, v_p - V),))
    return w2, b2


def roberta_mlm_head(inputs, w1, b1, gamma, beta, w2, b2, *,
                     eps=1e-5, tm=512, tv=2048, w2_buffers=2,
                     matmul_dtype=None, approximate_gelu=False,
                     vocab_size=None, vmem_limit_bytes=None):
    """inputs: (B, S, H).  w1: (H, H) = dense.weight.T, b1: (H,),
    gamma/beta: (H,), w2: (H, V) = decoder.weight.T (ideally pre-padded via
    pad_decoder_params), b2: (V,).  vocab_size: true V if w2 is pre-padded."""
    B, S, H = inputs.shape
    V_stored = w2.shape[1]
    V = V_stored if vocab_size is None else vocab_size
    rows = B * S
    in_dtype = inputs.dtype

    if matmul_dtype is None:
        # bf16 inputs already run a bf16 decoder matmul; f32 stays exact.
        matmul_dtype = jnp.bfloat16 if in_dtype == jnp.bfloat16 else in_dtype
    matmul_dtype = jnp.dtype(matmul_dtype)

    # --- choose tiles -------------------------------------------------------
    row_align = 8 if jnp.dtype(in_dtype).itemsize == 4 else 16
    # Guarantee >= 2 row tiles when rows allow it, so both v7x TensorCores get
    # work on the 'parallel' row axis; otherwise keep tm large (arith
    # intensity w.r.t. the streamed W2 ~ tm flop/byte).
    tm = min(tm, max(row_align, _round_up(pl.cdiv(rows, 2), row_align)))
    tv = min(tv, _round_up(V_stored, 128))       # lane-dense: multiple of 128
    rows_p = _round_up(rows, tm)
    v_p = _round_up(V_stored, tv)

    # --- pad rows (cheap) ----------------------------------------------------
    x2d = inputs.reshape(rows, H)
    if rows_p != rows:
        x2d = jnp.pad(x2d, ((0, rows_p - rows), (0, 0)))

    # --- decoder padding fallback (prefer pad_decoder_params at load time) ---
    w2p, b2p = w2, b2
    if v_p != V_stored:
        # TODO(synk): this copies the full decoder weight in HBM every call;
        # call pad_decoder_params() once at parameter-load time instead.
        w2p = jnp.pad(w2, ((0, 0), (0, v_p - V_stored)))
        b2p = jnp.pad(b2, ((0, v_p - V_stored),))

    b1_2d = b1.reshape(1, H)
    gamma_2d = gamma.reshape(1, H)
    beta_2d = beta.reshape(1, H)
    b2_2d = b2p.reshape(1, v_p)

    # --- VMEM budget from the actual tile footprint --------------------------
    in_b = jnp.dtype(in_dtype).itemsize
    w_b = jnp.dtype(w2.dtype).itemsize
    mm_b = matmul_dtype.itemsize
    footprint = (
        2 * tm * H * in_b              # x row tile (double-buffered)
        + H * H * w_b                  # W1 (single-buffered, grid-invariant)
        + 3 * H * w_b                  # b1, gamma, beta (single-buffered)
        + w2_buffers * H * tv * w_b    # streamed decoder weight tiles
        + 2 * tv * w_b                 # decoder bias tiles
        + 2 * tm * tv * in_b           # output tile (double-buffered)
        + tm * H * mm_b                # hn scratch
    )
    if vmem_limit_bytes is None:
        # Footprint + 25% + 2 MiB headroom for Mosaic internal scratch; at the
        # recommended tiles this stays well under v7x's 64 MiB per-TC VMEM.
        vmem_limit_bytes = int(footprint * 1.25) + (2 << 20)

    kernel = functools.partial(_mlm_head_kernel, eps=eps,
                               matmul_dtype=matmul_dtype,
                               approximate_gelu=approximate_gelu)

    grid = (rows_p // tm, v_p // tv)             # vocab axis innermost

    const_buf = pl.Buffered(1)                   # grid-invariant: no 2nd buffer
    in_specs = [
        pl.BlockSpec((tm, H), lambda i, j: (i, 0)),                       # x
        pl.BlockSpec((H, H), lambda i, j: (0, 0),
                     pipeline_mode=const_buf),                            # W1
        pl.BlockSpec((1, H), lambda i, j: (0, 0),
                     pipeline_mode=const_buf),                            # b1
        pl.BlockSpec((1, H), lambda i, j: (0, 0),
                     pipeline_mode=const_buf),                            # gamma
        pl.BlockSpec((1, H), lambda i, j: (0, 0),
                     pipeline_mode=const_buf),                            # beta
        pl.BlockSpec((H, tv), lambda i, j: (0, j),
                     pipeline_mode=pl.Buffered(w2_buffers)),              # W2 tile
        pl.BlockSpec((1, tv), lambda i, j: (0, j)),                       # b2 tile
    ]

    out2d = pl.pallas_call(
        kernel,
        out_shape=jax.ShapeDtypeStruct((rows_p, v_p), in_dtype),
        grid_spec=pltpu.PrefetchScalarGridSpec(
            num_scalar_prefetch=0,
            grid=grid,
            in_specs=in_specs,
            out_specs=pl.BlockSpec((tm, tv), lambda i, j: (i, j)),
            scratch_shapes=[pltpu.VMEM((tm, H), matmul_dtype)],  # hn over j
        ),
        compiler_params=pltpu.CompilerParams(
            # row axis parallel (megacore), vocab axis sequential because the
            # hn scratch is carried across it.
            dimension_semantics=("parallel", "arbitrary"),
            vmem_limit_bytes=vmem_limit_bytes,
        ),
    )(x2d, w1, b1_2d, gamma_2d, beta_2d, w2p, b2_2d)

    if rows_p != rows or v_p != V:
        out2d = out2d[:rows, :V]
    return out2d.reshape(B, S, V)


def _reference(inputs, w1, b1, gamma, beta, w2, b2, eps):
    x = inputs.astype(jnp.float32)
    h = x @ w1.astype(jnp.float32) + b1
    h = 0.5 * h * (1.0 + lax.erf(h / jnp.sqrt(2.0)))
    mean = jnp.mean(h, axis=-1, keepdims=True)
    var = jnp.mean((h - mean) ** 2, axis=-1, keepdims=True)
    hn = (h - mean) * lax.rsqrt(var + eps) * gamma + beta
    return (hn @ w2.astype(jnp.float32) + b2).astype(inputs.dtype)


if __name__ == "__main__":
    # Small synthetic config: embedding_dimension=32, vocab_size=64,
    # layer_norm_eps=1e-5, batch=2, seq=8.
    B, S, H, V = 2, 8, 32, 64
    eps = 1e-5

    key = jax.random.PRNGKey(0)
    k_x, k_w1, k_b1, k_g, k_be, k_w2, k_b2 = jax.random.split(key, 7)

    inputs = jax.random.normal(k_x, (B, S, H), dtype=jnp.float32)
    # Parameters stored as (in, out), i.e. PyTorch weight.T.
    w1 = jax.random.normal(k_w1, (H, H), dtype=jnp.float32) * 0.02
    b1 = jax.random.normal(k_b1, (H,), dtype=jnp.float32) * 0.02
    gamma = 1.0 + 0.01 * jax.random.normal(k_g, (H,), dtype=jnp.float32)
    beta = 0.01 * jax.random.normal(k_be, (H,), dtype=jnp.float32)
    w2 = jax.random.normal(k_w2, (H, V), dtype=jnp.float32) * 0.02
    b2 = jax.random.normal(k_b2, (V,), dtype=jnp.float32) * 0.02

    # Production callers should do this once at parameter-load time.
    w2_p, b2_p = pad_decoder_params(w2, b2, tv=2048)

    out = roberta_mlm_head(inputs, w1, b1, gamma, beta, w2_p, b2_p,
                           eps=eps, vocab_size=V)
    out = jax.block_until_ready(out)

    ref = _reference(inputs, w1, b1, gamma, beta, w2, b2, eps)
    assert out.shape == (B, S, V)
    assert jnp.allclose(out, ref, atol=1e-4, rtol=1e-4)

    print("KERNEL_OK")
</pallas_src>

<mosaic_0001>
module attributes {stable_mosaic.version = 11 : i64} {
  func.func @_mlm_head_kernel(%arg0: i32, %arg1: i32, %arg2: memref<8x32xf32, #tpu.memory_space<vmem>>, %arg3: memref<32x32xf32, #tpu.memory_space<vmem>>, %arg4: memref<1x32xf32, #tpu.memory_space<vmem>>, %arg5: memref<1x32xf32, #tpu.memory_space<vmem>>, %arg6: memref<1x32xf32, #tpu.memory_space<vmem>>, %arg7: memref<32x2048xf32, #tpu.memory_space<vmem>>, %arg8: memref<1x2048xf32, #tpu.memory_space<vmem>>, %arg9: memref<8x2048xf32, #tpu.memory_space<vmem>>, %arg10: memref<8x32xf32, #tpu.memory_space<vmem>>) attributes {dimension_semantics = [#tpu.dimension_semantics<parallel>, #tpu.dimension_semantics<arbitrary>], iteration_bounds = array<i64: 2, 1>, scalar_prefetch = 0 : i64, scratch_operands = 1 : i64, tpu.core_type = #tpu.core_type<tc>, window_params = [{transform_indices = @transform_0, window_bounds = array<i64: 8, 32>}, {pipeline_mode = #tpu.pipeline_mode<synchronous>, transform_indices = @transform_1, window_bounds = array<i64: 32, 32>}, {pipeline_mode = #tpu.pipeline_mode<synchronous>, transform_indices = @transform_2, window_bounds = array<i64: 1, 32>}, {pipeline_mode = #tpu.pipeline_mode<synchronous>, transform_indices = @transform_3, window_bounds = array<i64: 1, 32>}, {pipeline_mode = #tpu.pipeline_mode<synchronous>, transform_indices = @transform_4, window_bounds = array<i64: 1, 32>}, {pipeline_mode = #tpu.pipeline_mode<double_buffered>, transform_indices = @transform_5, window_bounds = array<i64: 32, 2048>}, {transform_indices = @transform_6, window_bounds = array<i64: 1, 2048>}, {transform_indices = @transform_7, window_bounds = array<i64: 8, 2048>}]} {
    %c0_i32 = arith.constant 0 : i32
    %0 = arith.cmpi eq, %arg1, %c0_i32 : i32
    %1 = arith.extui %0 : i1 to i32
    %c0_i32_0 = arith.constant 0 : i32
    %2 = arith.cmpi ne, %1, %c0_i32_0 : i32
    scf.if %2 {
      %c0_8 = arith.constant 0 : index
      %c0_9 = arith.constant 0 : index
      %10 = vector.load %arg2[%c0_8, %c0_9] : memref<8x32xf32, #tpu.memory_space<vmem>>, vector<8x32xf32>
      %c0_10 = arith.constant 0 : index
      %c0_11 = arith.constant 0 : index
      %11 = vector.load %arg3[%c0_10, %c0_11] : memref<32x32xf32, #tpu.memory_space<vmem>>, vector<32x32xf32>
      %cst_12 = arith.constant dense<0.000000e+00> : vector<8x32xf32>
      %12 = tpu.matmul %10, %11, %cst_12 {dimension_numbers = #tpu.dot_dimension_numbers<[1], [0], [0], [1], [0, 0, 1, 1], [], []>} : vector<8x32xf32>, vector<32x32xf32>, vector<8x32xf32> -> vector<8x32xf32>
      %c0_13 = arith.constant 0 : index
      %c0_14 = arith.constant 0 : index
      %13 = vector.load %arg4[%c0_13, %c0_14] : memref<1x32xf32, #tpu.memory_space<vmem>>, vector<1x32xf32>
      %14 = vector.broadcast %13 : vector<1x32xf32> to vector<8x32xf32>
      %15 = arith.addf %12, %14 : vector<8x32xf32>
      %cst_15 = arith.constant 5.000000e-01 : f32
      %16 = vector.broadcast %cst_15 : f32 to vector<8x32xf32>
      %17 = arith.mulf %16, %15 : vector<8x32xf32>
      %cst_16 = arith.constant 0.707106769 : f32
      %18 = vector.broadcast %cst_16 : f32 to vector<8x32xf32>
      %19 = arith.mulf %15, %18 : vector<8x32xf32>
      %20 = math.erf %19 : vector<8x32xf32>
      %cst_17 = arith.constant 1.000000e+00 : f32
      %21 = vector.broadcast %cst_17 : f32 to vector<8x32xf32>
      %22 = arith.addf %21, %20 : vector<8x32xf32>
      %23 = arith.mulf %17, %22 : vector<8x32xf32>
      %cst_18 = arith.constant dense<0.000000e+00> : vector<8xf32>
      %24 = vector.multi_reduction <add>, %23, %cst_18 [1] : vector<8x32xf32> to vector<8xf32>
      %25 = vector.shape_cast %24 : vector<8xf32> to vector<8x1xf32>
      %cst_19 = arith.constant 3.200000e+01 : f32
      %26 = vector.broadcast %cst_19 : f32 to vector<8x1xf32>
      %27 = arith.divf %25, %26 : vector<8x1xf32>
      %28 = vector.broadcast %27 : vector<8x1xf32> to vector<8x32xf32>
      %29 = arith.subf %23, %28 : vector<8x32xf32>
      %30 = arith.mulf %29, %29 : vector<8x32xf32>
      %cst_20 = arith.constant dense<0.000000e+00> : vector<8xf32>
      %31 = vector.multi_reduction <add>, %30, %cst_20 [1] : vector<8x32xf32> to vector<8xf32>
      %32 = vector.shape_cast %31 : vector<8xf32> to vector<8x1xf32>
      %cst_21 = arith.constant 3.200000e+01 : f32
      %33 = vector.broadcast %cst_21 : f32 to vector<8x1xf32>
      %34 = arith.divf %32, %33 : vector<8x1xf32>
      %cst_22 = arith.constant 9.99999974E-6 : f32
      %35 = vector.broadcast %cst_22 : f32 to vector<8x1xf32>
      %36 = arith.addf %34, %35 : vector<8x1xf32>
      %37 = math.rsqrt %36 : vector<8x1xf32>
      %38 = vector.broadcast %37 : vector<8x1xf32> to vector<8x32xf32>
      %39 = arith.mulf %29, %38 : vector<8x32xf32>
      %c0_23 = arith.constant 0 : index
      %c0_24 = arith.constant 0 : index
      %40 = vector.load %arg5[%c0_23, %c0_24] : memref<1x32xf32, #tpu.memory_space<vmem>>, vector<1x32xf32>
      %41 = vector.broadcast %40 : vector<1x32xf32> to vector<8x32xf32>
      %42 = arith.mulf %39, %41 : vector<8x32xf32>
      %c0_25 = arith.constant 0 : index
      %c0_26 = arith.constant 0 : index
      %43 = vector.load %arg6[%c0_25, %c0_26] : memref<1x32xf32, #tpu.memory_space<vmem>>, vector<1x32xf32>
      %44 = vector.broadcast %43 : vector<1x32xf32> to vector<8x32xf32>
      %45 = arith.addf %42, %44 : vector<8x32xf32>
      %c0_27 = arith.constant 0 : index
      %c0_28 = arith.constant 0 : index
      %46 = vector.load %arg10[%c0_27, %c0_28] : memref<8x32xf32, #tpu.memory_space<vmem>>, vector<8x32xf32>
      tpu.vector_store %arg10[%c0_27, %c0_28], %45 {strides = array<i32>} : memref<8x32xf32, #tpu.memory_space<vmem>>, vector<8x32xf32>,
    } else {
    }
    %c0 = arith.constant 0 : index
    %c0_1 = arith.constant 0 : index
    %3 = vector.load %arg7[%c0, %c0_1] : memref<32x2048xf32, #tpu.memory_space<vmem>>, vector<32x2048xf32>
    %c0_2 = arith.constant 0 : index
    %c0_3 = arith.constant 0 : index
    %4 = vector.load %arg10[%c0_2, %c0_3] : memref<8x32xf32, #tpu.memory_space<vmem>>, vector<8x32xf32>
    %cst = arith.constant dense<0.000000e+00> : vector<8x2048xf32>
    %5 = tpu.matmul %4, %3, %cst {dimension_numbers = #tpu.dot_dimension_numbers<[1], [0], [0], [1], [0, 0, 1, 1], [], []>} : vector<8x32xf32>, vector<32x2048xf32>, vector<8x2048xf32> -> vector<8x2048xf32>
    %c0_4 = arith.constant 0 : index
    %c0_5 = arith.constant 0 : index
    %6 = vector.load %arg8[%c0_4, %c0_5] : memref<1x2048xf32, #tpu.memory_space<vmem>>, vector<1x2048xf32>
    %7 = vector.broadcast %6 : vector<1x2048xf32> to vector<8x2048xf32>
    %8 = arith.addf %5, %7 : vector<8x2048xf32>
    %c0_6 = arith.constant 0 : index
    %c0_7 = arith.constant 0 : index
    %9 = vector.load %arg9[%c0_6, %c0_7] : memref<8x2048xf32, #tpu.memory_space<vmem>>, vector<8x2048xf32>
    tpu.vector_store %arg9[%c0_6, %c0_7], %8 {strides = array<i32>} : memref<8x2048xf32, #tpu.memory_space<vmem>>, vector<8x2048xf32>,
    return
  }
  func.func @transform_0(%arg0: i32, %arg1: i32) -> (i32, i32) {
    %c0_i32 = arith.constant 0 : i32
    %c0_i32_0 = arith.constant 0 : i32
    return %arg0, %c0_i32 : i32, i32
  }
  func.func @transform_1(%arg0: i32, %arg1: i32) -> (i32, i32) {
    %c0_i32 = arith.constant 0 : i32
    %c0_i32_0 = arith.constant 0 : i32
    %c0_i32_1 = arith.constant 0 : i32
    return %c0_i32, %c0_i32_0 : i32, i32
  }
  func.func @transform_2(%arg0: i32, %arg1: i32) -> (i32, i32) {
    %c0_i32 = arith.constant 0 : i32
    %c0_i32_0 = arith.constant 0 : i32
    %c0_i32_1 = arith.constant 0 : i32
    return %c0_i32, %c0_i32_0 : i32, i32
  }
  func.func @transform_3(%arg0: i32, %arg1: i32) -> (i32, i32) {
    %c0_i32 = arith.constant 0 : i32
    %c0_i32_0 = arith.constant 0 : i32
    %c0_i32_1 = arith.constant 0 : i32
    return %c0_i32, %c0_i32_0 : i32, i32
  }
  func.func @transform_4(%arg0: i32, %arg1: i32) -> (i32, i32) {
    %c0_i32 = arith.constant 0 : i32
    %c0_i32_0 = arith.constant 0 : i32
    %c0_i32_1 = arith.constant 0 : i32
    return %c0_i32, %c0_i32_0 : i32, i32
  }
  func.func @transform_5(%arg0: i32, %arg1: i32) -> (i32, i32) {
    %c0_i32 = arith.constant 0 : i32
    %c0_i32_0 = arith.constant 0 : i32
    return %c0_i32, %arg1 : i32, i32
  }
  func.func @transform_6(%arg0: i32, %arg1: i32) -> (i32, i32) {
    %c0_i32 = arith.constant 0 : i32
    %c0_i32_0 = arith.constant 0 : i32
    return %c0_i32, %arg1 : i32, i32
  }
  func.func @transform_7(%arg0: i32, %arg1: i32) -> (i32, i32) {
    %c0_i32 = arith.constant 0 : i32
    return %arg0, %arg1 : i32, i32
  }
}

</mosaic_0001>

<llo_original>
// kernel: tpu_custom_call.1
$region0: #{tpu_custom_call.1}
  #allocation0 [shape = 'u32[]', space=smem, size = 0x4, offset = 0x4, fixed_abs, tag = 'smem constant byte address 0x4 - core index']
  #allocation1 [shape = 'u32[144,128]{1,0:T(1,128)}', space=vmem, size = 0x12000, scoped, tag = 'internal scratch']
  #allocation2 [shape = 'f32[8,32]{1,0:T(8,128)}', space=vmem, size = 0x1000, scoped, tag = 'scratch operand']
  %s0 = inlined_call_operand.hbm [shape: f32[16,32], index: 0, kind: input, shape index: {}]
  %s1 = inlined_call_operand.hbm [shape: f32[32,32], index: 1, kind: input, shape index: {}]
  %s2 = inlined_call_operand.vmem [shape: f32[1,32], index: 2, kind: input, shape index: {}]
  %s3 = inlined_call_operand.vmem [shape: f32[1,32], index: 3, kind: input, shape index: {}]
  %s4 = inlined_call_operand.vmem [shape: f32[1,32], index: 4, kind: input, shape index: {}]
  %s5 = inlined_call_operand.hbm [shape: f32[32,2048], index: 5, kind: input, shape index: {}]
  %s6 = inlined_call_operand.vmem [shape: f32[1,2048], index: 6, kind: input, shape index: {}]
  %s7 = inlined_call_operand.hbm [shape: f32[16,2048], index: 7, kind: output, shape index: {}]
  %s8 = sld [smem:[#allocation0]]
  $region77: #{tpu_custom_call.1} parent=0
    _
  %s10 = ssub.s32 1, %s8
  %s11 = scalar_select 0, %s10, %s8
  $region1: #{tpu_custom_call.1} parent=0
    #allocation3 [shape = 'u8[8192]{0}', space=vmem, size = 0x2000, scoped, tag = 'input window, operand 0']
    #allocation4 [shape = 's32[2]{0}', space=sflag, size = 0x8, scoped, tag = 'scoped memory for tpu_custom_call.1']
    #allocation5 [shape = 's32[2]{0}', space=sflag, size = 0x8, scoped, tag = 'scoped memory for tpu_custom_call.1']
    #allocation6 [shape = 'u8[16384]{0}', space=vmem, size = 0x4000, scoped, tag = 'input window, operand 1, single buffered']
    #allocation7 [shape = 's32[1]{0}', space=sflag, size = 0x4, scoped, tag = 'scoped memory for tpu_custom_call.1']
    #allocation8 [shape = 'u8[262144]{0}', space=vmem, size = 0x40000, scoped, tag = 'input window, operand 5, single buffered']
    #allocation9 [shape = 'u8[131072]{0}', space=vmem, size = 0x20000, scoped, tag = 'output window, operand 0']
    %12 = vsyncpa [#allocation4], 0
    %s13 = scalar_lea.sflag [#allocation4], 1
    %14 = vsyncpa %s13, 0
    %15 = vsyncpa [#allocation7], 0
    %16 = vsyncpa [#allocation5], 0
    %s17 = scalar_lea.sflag [#allocation5], 1
    %18 = vsyncpa %s17, 0
    loop: start=0, step=1, limit=4
    $region2: #{tpu_custom_call.1} parent=1 // loop_pre_header
      _
    $region3: #{tpu_custom_call.1} parent=1 // loop_header
      %s20 = sphi 0, %s24
      %p21 = scmp.ge.s32.totalorder %s20, 4
      %s27 = sphi 0, %s39
      %s28 = sphi 0, %s35
      %s29 = sphi 0, %s27
      %s30 = sphi 0, %s28
      %s31 = sphi 0, %s29
      %s32 = sphi 0, %s30
      %s42 = sphi 0, %s44
      %s45 = sphi 0, %s42
      %s46 = sphi 0, %s45
      %s62 = sphi 0, %s46
      %s66 = sphi 0, %s66
      %s68 = sphi 0, %s66
      %s69 = sphi 0, %s68
      %s83 = sphi 0, %s69
      %s87 = sphi 0, %s87
      %s89 = sphi 0, %s87
      %s90 = sphi 0, %s89
      %s104 = sphi 0, %s90
      %s108 = sphi 0, %s108
      %s110 = sphi 0, %s108
      %s111 = sphi 0, %s110
      %s125 = sphi 0, %s111
      %s129 = sphi 0, %s129
      %s131 = sphi 0, %s129
      %s132 = sphi 0, %s131
      %s146 = sphi 0, %s132
      %s152 = sphi 0, %s154
      %s155 = sphi 0, %s152
      %s156 = sphi 0, %s155
      %s172 = sphi 0, %s156
      %s178 = sphi 0, %s180
      %s181 = sphi 0, %s178
      %s182 = sphi 0, %s181
      %s198 = sphi 0, %s182
      %s206 = sphi 0, %s208
      %s209 = sphi 0, %s206
      %s210 = sphi 0, %s209
      %s226 = sphi 0, %s210
    $region4: #{tpu_custom_call.1} parent=1 // loop_header_branch
      %23 = sbr.rel (%p21) target = $region8
    $region5: #{tpu_custom_call.1} parent=1 // loop_body
      %s25 = ssub.s32 %s20, 1
      %s26 = ssub.s32 %s20, 2
      %s33 = sadd.s32 1, %s28
      %p34 = scmp.ge.s32.totalorder %s33, 1
      %s35 = scalar_select %p34, 0, %s33
      %s36 = sadd.s32 1, %s27
      %s37 = scalar_select %p34, %s36, %s27
      %p38 = scmp.ge.s32.totalorder %s37, 2
      %s39 = scalar_select %p38, 0, %s37
      %s40 = ssub.s32 %s27, %s39
      %p41 = scmp.eq.s32.totalorder %s40, 0
      %s43 = sadd.s32 %s42, 1
      %s44 = scalar_select %p41, %s42, %s43
      %p47 = pneg %p41
      %p48 = scmp.eq.s32.totalorder %s20, 1
      %p49 = por %p47, %p48
      %p50 = scmp.ne.s32.totalorder %s42, %s45
      %p51 = scmp.eq.s32.totalorder %s20, 0
      %p52 = por %p50, %p51
      %p53 = scmp.ne.s32.totalorder %s42, %s45
      %p54 = scmp.eq.s32.totalorder %s25, 1
      %p55 = por %p53, %p54
      %p56 = scmp.ne.s32.totalorder %s45, %s46
      %p57 = scmp.eq.s32.totalorder %s25, 0
      %p58 = por %p56, %p57
      %p59 = scmp.ne.s32.totalorder %s45, %s46
      %p60 = scmp.eq.s32.totalorder %s26, 1
      %p61 = por %p59, %p60
      %p63 = scmp.ne.s32.totalorder %s46, %s62
      %p64 = scmp.eq.s32.totalorder %s26, 0
      %p65 = por %p63, %p64
      %s67 = sadd.s32 %s66, 1
      %p70 = scmp.eq.s32.totalorder %s20, 1
      %p71 = scmp.ne.s32.totalorder %s66, %s68
      %p72 = scmp.eq.s32.totalorder %s20, 0
      %p73 = por %p71, %p72
      %p74 = scmp.ne.s32.totalorder %s66, %s68
      %p75 = scmp.eq.s32.totalorder %s25, 1
      %p76 = por %p74, %p75
      %p77 = scmp.ne.s32.totalorder %s68, %s69
      %p78 = scmp.eq.s32.totalorder %s25, 0
      %p79 = por %p77, %p78
      %p80 = scmp.ne.s32.totalorder %s68, %s69
      %p81 = scmp.eq.s32.totalorder %s26, 1
      %p82 = por %p80, %p81
      %p84 = scmp.ne.s32.totalorder %s69, %s83
      %p85 = scmp.eq.s32.totalorder %s26, 0
      %p86 = por %p84, %p85
      %s88 = sadd.s32 %s87, 1
      %p91 = scmp.eq.s32.totalorder %s20, 1
      %p92 = scmp.ne.s32.totalorder %s87, %s89
      %p93 = scmp.eq.s32.totalorder %s20, 0
      %p94 = por %p92, %p93
      %p95 = scmp.ne.s32.totalorder %s87, %s89
      %p96 = scmp.eq.s32.totalorder %s25, 1
      %p97 = por %p95, %p96
      %p98 = scmp.ne.s32.totalorder %s89, %s90
      %p99 = scmp.eq.s32.totalorder %s25, 0
      %p100 = por %p98, %p99
      %p101 = scmp.ne.s32.totalorder %s89, %s90
      %p102 = scmp.eq.s32.totalorder %s26, 1
      %p103 = por %p101, %p102
      %p105 = scmp.ne.s32.totalorder %s90, %s104
      %p106 = scmp.eq.s32.totalorder %s26, 0
      %p107 = por %p105, %p106
      %s109 = sadd.s32 %s108, 1
      %p112 = scmp.eq.s32.totalorder %s20, 1
      %p113 = scmp.ne.s32.totalorder %s108, %s110
      %p114 = scmp.eq.s32.totalorder %s20, 0
      %p115 = por %p113, %p114
      %p116 = scmp.ne.s32.totalorder %s108, %s110
      %p117 = scmp.eq.s32.totalorder %s25, 1
      %p118 = por %p116, %p117
      %p119 = scmp.ne.s32.totalorder %s110, %s111
      %p120 = scmp.eq.s32.totalorder %s25, 0
      %p121 = por %p119, %p120
      %p122 = scmp.ne.s32.totalorder %s110, %s111
      %p123 = scmp.eq.s32.totalorder %s26, 1
      %p124 = por %p122, %p123
      %p126 = scmp.ne.s32.totalorder %s111, %s125
      %p127 = scmp.eq.s32.totalorder %s26, 0
      %p128 = por %p126, %p127
      %s130 = sadd.s32 %s129, 1
      %p133 = scmp.eq.s32.totalorder %s20, 1
      %p134 = scmp.ne.s32.totalorder %s129, %s131
      %p135 = scmp.eq.s32.totalorder %s20, 0
      %p136 = por %p134, %p135
      %p137 = scmp.ne.s32.totalorder %s129, %s131
      %p138 = scmp.eq.s32.totalorder %s25, 1
      %p139 = por %p137, %p138
      %p140 = scmp.ne.s32.totalorder %s131, %s132
      %p141 = scmp.eq.s32.totalorder %s25, 0
      %p142 = por %p140, %p141
      %p143 = scmp.ne.s32.totalorder %s131, %s132
      %p144 = scmp.eq.s32.totalorder %s26, 1
      %p145 = por %p143, %p144
      %p147 = scmp.ne.s32.totalorder %s132, %s146
      %p148 = scmp.eq.s32.totalorder %s26, 0
      %p149 = por %p147, %p148
      %s150 = ssub.s32 %s28, %s35
      %p151 = scmp.eq.s32.totalorder %s150, 0
      %s153 = sadd.s32 %s152, 1
      %s154 = scalar_select %p151, %s152, %s153
      %p157 = pneg %p151
      %p158 = scmp.eq.s32.totalorder %s20, 1
      %p159 = por %p157, %p158
      %p160 = scmp.ne.s32.totalorder %s152, %s155
      %p161 = scmp.eq.s32.totalorder %s20, 0
      %p162 = por %p160, %p161
      %p163 = scmp.ne.s32.totalorder %s152, %s155
      %p164 = scmp.eq.s32.totalorder %s25, 1
      %p165 = por %p163, %p164
      %p166 = scmp.ne.s32.totalorder %s155, %s156
      %p167 = scmp.eq.s32.totalorder %s25, 0
      %p168 = por %p166, %p167
      %p169 = scmp.ne.s32.totalorder %s155, %s156
      %p170 = scmp.eq.s32.totalorder %s26, 1
      %p171 = por %p169, %p170
      %p173 = scmp.ne.s32.totalorder %s156, %s172
      %p174 = scmp.eq.s32.totalorder %s26, 0
      %p175 = por %p173, %p174
      %s176 = ssub.s32 %s28, %s35
      %p177 = scmp.eq.s32.totalorder %s176, 0
      %s179 = sadd.s32 %s178, 1
      %s180 = scalar_select %p177, %s178, %s179
      %p183 = pneg %p177
      %p184 = scmp.eq.s32.totalorder %s20, 1
      %p185 = por %p183, %p184
      %p186 = scmp.ne.s32.totalorder %s178, %s181
      %p187 = scmp.eq.s32.totalorder %s20, 0
      %p188 = por %p186, %p187
      %p189 = scmp.ne.s32.totalorder %s178, %s181
      %p190 = scmp.eq.s32.totalorder %s25, 1
      %p191 = por %p189, %p190
      %p192 = scmp.ne.s32.totalorder %s181, %s182
      %p193 = scmp.eq.s32.totalorder %s25, 0
      %p194 = por %p192, %p193
      %p195 = scmp.ne.s32.totalorder %s181, %s182
      %p196 = scmp.eq.s32.totalorder %s26, 1
      %p197 = por %p195, %p196
      %p199 = scmp.ne.s32.totalorder %s182, %s198
      %p200 = scmp.eq.s32.totalorder %s26, 0
      %p201 = por %p199, %p200
      %s202 = ssub.s32 %s27, %s39
      %s203 = ssub.s32 %s28, %s35
      %s204 = sor.u32 %s202, %s203
      %p205 = scmp.eq.s32.totalorder %s204, 0
      %s207 = sadd.s32 %s206, 1
      %s208 = scalar_select %p205, %s206, %s207
      %p211 = pneg %p205
      %p212 = scmp.eq.s32.totalorder %s20, 1
      %p213 = por %p211, %p212
      %p214 = scmp.ne.s32.totalorder %s206, %s209
      %p215 = scmp.eq.s32.totalorder %s20, 0
      %p216 = por %p214, %p215
      %p217 = scmp.ne.s32.totalorder %s206, %s209
      %p218 = scmp.eq.s32.totalorder %s25, 1
      %p219 = por %p217, %p218
      %p220 = scmp.ne.s32.totalorder %s209, %s210
      %p221 = scmp.eq.s32.totalorder %s25, 0
      %p222 = por %p220, %p221
      %p223 = scmp.ne.s32.totalorder %s209, %s210
      %p224 = scmp.eq.s32.totalorder %s26, 1
      %p225 = por %p223, %p224
      %p227 = scmp.ne.s32.totalorder %s210, %s226
      %p228 = scmp.eq.s32.totalorder %s26, 0
      %p229 = por %p227, %p228
      %p230 = scmp.le.s32.totalorder 1, %s20
      %p231 = scmp.lt.s32.totalorder %s20, 3
      %p232 = pnand %p230, %p231
      %p233 = pneg %p232
      // Predicated region
      $region9: #{tpu_custom_call.1} parent=5 // pred_check
        _
      $region10: #{tpu_custom_call.1} parent=5 // pred_check_branch
        %235 = sbr.rel (%p232) target = $region12
      $region11: #{tpu_custom_call.1} parent=5 // pred_region
        %s236 = ssub.s32 %s20, 1
        // Predicated region
        $region13: #{tpu_custom_call.1} parent=11 // pred_check
          %p237 = pneg %p79
        $region14: #{tpu_custom_call.1} parent=11 // pred_check_branch
          %239 = sbr.rel (%p237) target = $region16
        $region15: #{tpu_custom_call.1} parent=11 // pred_region
          %s241 = ssub.s32 512, 512
          %242 = vsyncadd [#allocation7], %s241
          %s243 = sshll.u32 [#allocation6], 4
          %s244 = int_to_ptr.vmem [resolvable:$true] %s243
          %249 = dma.hbm_to_vmem [thread:$0]  %s1, 512, %s244, [#allocation7], 128, 128, 8
        $region16: #{tpu_custom_call.1} parent=11 // pred_fallthru
          _
        // Predicated region
        $region17: #{tpu_custom_call.1} parent=11 // pred_check
          %p250 = pneg %p100
        $region18: #{tpu_custom_call.1} parent=11 // pred_check_branch
          %252 = sbr.rel (%p250) target = $region20
        $region19: #{tpu_custom_call.1} parent=11 // pred_region
          _
        $region20: #{tpu_custom_call.1} parent=11 // pred_fallthru
          _
        // Predicated region
        $region21: #{tpu_custom_call.1} parent=11 // pred_check
          %p253 = pneg %p121
        $region22: #{tpu_custom_call.1} parent=11 // pred_check_branch
          %255 = sbr.rel (%p253) target = $region24
        $region23: #{tpu_custom_call.1} parent=11 // pred_region
          _
        $region24: #{tpu_custom_call.1} parent=11 // pred_fallthru
          _
        // Predicated region
        $region25: #{tpu_custom_call.1} parent=11 // pred_check
          %p256 = pneg %p142
        $region26: #{tpu_custom_call.1} parent=11 // pred_check_branch
          %258 = sbr.rel (%p256) target = $region28
        $region27: #{tpu_custom_call.1} parent=11 // pred_region
          _
        $region28: #{tpu_custom_call.1} parent=11 // pred_fallthru
          _
        // Predicated region
        $region29: #{tpu_custom_call.1} parent=11 // pred_check
          %p259 = pneg %p168
        $region30: #{tpu_custom_call.1} parent=11 // pred_check_branch
          %261 = sbr.rel (%p259) target = $region32
        $region31: #{tpu_custom_call.1} parent=11 // pred_region
          %s262 = smul.u32 16, %s30
          %s264 = ssub.s32 8192, 8192
          %265 = vsyncadd [#allocation7], %s264
          %s266 = smul.addr %s262, 128
          %s267 = scalar_lea.hbm %s5, %s266
          %s268 = sshll.u32 [#allocation8], 4
          %s269 = int_to_ptr.vmem [resolvable:$true] %s268
          %274 = dma.hbm_to_vmem [thread:$0]  %s267, 8192, %s269, [#allocation7], 2048, 2048, 128
        $region32: #{tpu_custom_call.1} parent=11 // pred_fallthru
          _
        // Predicated region
        $region33: #{tpu_custom_call.1} parent=11 // pred_check
          %p275 = pneg %p194
        $region34: #{tpu_custom_call.1} parent=11 // pred_check_branch
          %277 = sbr.rel (%p275) target = $region36
        $region35: #{tpu_custom_call.1} parent=11 // pred_region
          %s278 = smul.u32 16, %s30
          %p279 = scmp.lt.s32.totalorder %s278, 15
          %s280 = scalar_select %p279, %s278, 15
          %s281 = scalar_lea.vmem %s6, %s280
          %s282 = smul.u32 16, %s30
        $region36: #{tpu_custom_call.1} parent=11 // pred_fallthru
          _
      $region12: #{tpu_custom_call.1} parent=5 // pred_fallthru
        _
      %p283 = scmp.lt.s32.totalorder %s20, 2
      // Predicated region
      $region37: #{tpu_custom_call.1} parent=5 // pred_check
        %p284 = pneg %p283
      $region38: #{tpu_custom_call.1} parent=5 // pred_check_branch
        %286 = sbr.rel (%p284) target = $region40
      $region39: #{tpu_custom_call.1} parent=5 // pred_region
        // Predicated region
        $region41: #{tpu_custom_call.1} parent=39 // pred_check
          %p287 = pneg %p52
        $region42: #{tpu_custom_call.1} parent=39 // pred_check_branch
          %289 = sbr.rel (%p287) target = $region44
        $region43: #{tpu_custom_call.1} parent=39 // pred_region
          %s290 = sand.u32 %s42, 1
          %s291 = scalar_lea.sflag [#allocation4], %s290
          %s292 = sand.u32 %s42, 1
          %s293 = smul.addr %s292, 8
          %s294 = scalar_lea.vmem [#allocation3], %s293
          %s296 = ssub.s32 128, 128
          %297 = vsyncadd %s291, %s296
          %s298 = smul.addr %s27, 128
          %s299 = scalar_lea.hbm %s0, %s298
          %s301 = sshll.u32 %s294, 4
          %s302 = int_to_ptr.vmem [resolvable:$true] %s301
          %304 = dma.hbm_to_vmem [thread:$0]  %s299, 128, %s302, %s291
        $region44: #{tpu_custom_call.1} parent=39 // pred_fallthru
          _
      $region40: #{tpu_custom_call.1} parent=5 // pred_fallthru
        _
      %p305 = scmp.le.s32.totalorder 1, %s20
      %p306 = scmp.lt.s32.totalorder %s20, 3
      %p307 = pnand %p305, %p306
      %p308 = pneg %p307
      // Predicated region
      $region45: #{tpu_custom_call.1} parent=5 // pred_check
        _
      $region46: #{tpu_custom_call.1} parent=5 // pred_check_branch
        %310 = sbr.rel (%p307) target = $region48
      $region47: #{tpu_custom_call.1} parent=5 // pred_region
        %s311 = ssub.s32 %s20, 1
        %s312 = sand.u32 %s45, 1
        %s313 = scalar_lea.sflag [#allocation4], %s312
        %s314 = sand.u32 %s45, 1
        %s315 = smul.addr %s314, 8
        %s316 = scalar_lea.vmem [#allocation3], %s315
        // Predicated region
        $region49: #{tpu_custom_call.1} parent=47 // pred_check
          %p317 = pneg %p58
        $region50: #{tpu_custom_call.1} parent=47 // pred_check_branch
          %319 = sbr.rel (%p317) target = $region52
        $region51: #{tpu_custom_call.1} parent=47 // pred_region
          %320 = dma.done %s313, 128
        $region52: #{tpu_custom_call.1} parent=47 // pred_fallthru
          _
        // Predicated region
        $region53: #{tpu_custom_call.1} parent=47 // pred_check
          %p321 = pneg %p79
        $region54: #{tpu_custom_call.1} parent=47 // pred_check_branch
          %323 = sbr.rel (%p321) target = $region56
        $region55: #{tpu_custom_call.1} parent=47 // pred_region
          %324 = dma.done [#allocation7], 512
        $region56: #{tpu_custom_call.1} parent=47 // pred_fallthru
          _
        // Predicated region
        $region57: #{tpu_custom_call.1} parent=47 // pred_check
          %p325 = pneg %p168
        $region58: #{tpu_custom_call.1} parent=47 // pred_check_branch
          %327 = sbr.rel (%p325) target = $region60
        $region59: #{tpu_custom_call.1} parent=47 // pred_region
          %328 = dma.done [#allocation7], 8192
        $region60: #{tpu_custom_call.1} parent=47 // pred_fallthru
          _
        %s329 = sand.u32 %s45, 1
        %s330 = scalar_lea.sflag [#allocation4], %s329
        %s331 = sand.u32 %s45, 1
        %s332 = smul.addr %s331, 8
        %s333 = scalar_lea.vmem [#allocation3], %s332
        %p334 = pneg %p58
        %p335 = pneg %p55
        %p336 = pneg %p79
        %p337 = pneg %p76
        %p338 = pneg %p100
        %p339 = pneg %p97
        %p340 = pneg %p121
        %p341 = pneg %p118
        %p342 = pneg %p142
        %p343 = pneg %p139
        %p344 = pneg %p168
        %p345 = pneg %p165
        %s346 = smul.u32 16, %s30
        %p347 = scmp.lt.s32.totalorder %s346, 15
        %s348 = scalar_select %p347, %s346, 15
        %s349 = scalar_lea.vmem %s6, %s348
        %p350 = pneg %p194
        %p351 = pneg %p191
        %p352 = pneg %p222
        %p353 = pneg %p219
        %s354 = sand.u32 %s209, 1
        %s355 = scalar_lea.sflag [#allocation5], %s354
        %s356 = sand.u32 %s209, 1
        %s357 = smul.addr %s356, 128
        %s358 = scalar_lea.vmem [#allocation9], %s357
        %s359 = smul.u32 16, %s30
        %s360 = smul.u32 16, %s30
        %p361 = scmp.lt.s32.totalorder %s360, 15
        %s362 = scalar_select %p361, %s360, 15
        %s363 = scalar_lea.vmem %s6, %s362
        %s364 = smul.u32 16, %s30
        %s365 = smul.u32 16, %s30
        %p366 = scmp.eq.s32.totalorder %s30, 0
        // Predicated region
        $region61: #{tpu_custom_call.1} parent=47 // pred_check
          %p367 = pneg %p366
        $region62: #{tpu_custom_call.1} parent=47 // pred_check_branch
          %369 = sbr.rel (%p367) target = $region64
        $region63: #{tpu_custom_call.1} parent=47 // pred_region
          %v370 = vld [vmem:[%s316] sm:$0xff]
          %v371 = vld [vmem:[#allocation6] sm:$0xff]
          %v372 = vld [vmem:[#allocation6 + $0x8] sm:$0xff]
          %v373 = vld [vmem:[#allocation6 + $0x10] sm:$0xff]
          %v374 = vld [vmem:[#allocation6 + $0x18] sm:$0xff]
          %v375 = vld [vmem:[%s2] sm:$0x1]
          %v377 = vlaneseq
          %v378 = vshrl.u32 %v377, 7
          %v379 = vsub.s32 0, %v378
          %v380 = vrot.slane %v375, %v379
          %vm382 = vcmask 261120
          %v384 = vsel %vm382, %v370, 0
          %386 = vmatprep.subr.mxu0 0.0
          %387 = vmatpush1.msra.mxu0 %v371
          %388 = vmatprep.subr.mxu0 0.0
          %389 = vmatpush1.msra.mxu0 %v372
          %390 = vmatprep.subr.mxu0 0.0
          %391 = vmatpush1.msra.mxu0 %v373
          %392 = vmatprep.subr.mxu0 0.0
          %393 = vmatpush1.msra.mxu0 %v374
          %394 = vmatprep.subr.mxu0 0.0
          %395 = vmatpush1.msra.mxu0 0.0
          %396 = vmatprep.subr.mxu0 0.0
          %397 = vmatpush1.msra.mxu0 0.0
          %398 = vmatprep.subr.mxu0 0.0
          %399 = vmatpush1.msra.mxu0 0.0
          %400 = vmatprep.subr.mxu0 0.0
          %401 = vmatpush1.msra.mxu0 0.0
          %402 = vmatprep.subr.mxu0 0.0
          %403 = vmatpush1.msra.mxu0 0.0
          %404 = vmatprep.subr.mxu0 0.0
          %405 = vmatpush1.msra.mxu0 0.0
          %406 = vmatprep.subr.mxu0 0.0
          %407 = vmatpush1.msra.mxu0 0.0
          %408 = vmatprep.subr.mxu0 0.0
          %409 = vmatpush1.msra.mxu0 0.0
          %410 = vmatprep.subr.mxu0 0.0
          %411 = vmatpush1.msra.mxu0 0.0
          %412 = vmatprep.subr.mxu0 0.0
          %413 = vmatpush1.msra.mxu0 0.0
          %414 = vmatprep.subr.mxu0 0.0
          %415 = vmatpush1.msra.mxu0 0.0
          %416 = vmatprep.subr.mxu0 0.0
          %417 = vmatpush1.msra.mxu0 0.0
          %418 = vmatprep.subr.mxu0 0.0
          %419 = vmatpush1.msra.mxu0 0.0
          %420 = vmatprep.subr.mxu0 0.0
          %421 = vmatpush1.msra.mxu0 0.0
          %422 = vmatprep.subr.mxu0 0.0
          %423 = vmatpush1.msra.mxu0 0.0
          %424 = vmatprep.subr.mxu0 0.0
          %425 = vmatpush1.msra.mxu0 0.0
          %426 = vmatprep.subr.mxu0 0.0
          %427 = vmatpush1.msra.mxu0 0.0
          %428 = vmatprep.subr.mxu0 0.0
          %429 = vmatpush1.msra.mxu0 0.0
          %430 = vmatprep.subr.mxu0 0.0
          %431 = vmatpush1.msra.mxu0 0.0
          %432 = vmatprep.subr.mxu0 0.0
          %433 = vmatpush1.msra.mxu0 0.0
          %434 = vmatprep.subr.mxu0 0.0
          %435 = vmatpush1.msra.mxu0 0.0
          %436 = vmatprep.subr.mxu0 0.0
          %437 = vmatpush1.msra.mxu0 0.0
          %438 = vmatprep.subr.mxu0 0.0
          %439 = vmatpush1.msra.mxu0 0.0
          %440 = vmatprep.subr.mxu0 0.0
          %441 = vmatpush1.msra.mxu0 0.0
          %442 = vmatprep.subr.mxu0 0.0
          %443 = vmatpush1.msra.mxu0 0.0
          %444 = vmatprep.subr.mxu0 0.0
          %445 = vmatpush1.msra.mxu0 0.0
          %446 = vmatprep.subr.mxu0 0.0
          %447 = vmatpush1.msra.mxu0 0.0
          %448 = vmatprep.subr.mxu0 0.0
          %449 = vmatpush1.msra.mxu0 0.0
          %450 = vmatprep.mubr.f32.mxu0 0.0
          %451 = vmatmul.mubr.f32.gmra.mrb[0].mxu0 %v384
          %v452 = vpop.f32.mrb[0].mxu0
          %v453 = vadd.f32 %v380, %v452
          %v454 = vpop.f32.mrb[0].mxu0
          %455 = vdwg.mxu0
          %v456 = vmul.f32 %v453, 0.5
          %v457 = vmul.f32 %v453, 0.70710677
          %v458 = verf.f32.pop %v457
          %v459 = vadd.f32 %v458, 1.0
          %v460 = vmul.f32 %v456, %v459
          %v461 = vsel %vm382, %v460, 0.0
          %462 = vadd.xlane.f32.xlu0 %v461
          %v463 = vpop.xlane.xlu0 %462
          %v464 = vrcp.pop 32.0
          %v465 = vmul.f32 %v463, %v464
          %v466 = vsub.f32 %v460, %v465
          %v467 = vmul.f32 %v466, %v466
          %v468 = vsel %vm382, %v467, 0.0
          %469 = vadd.xlane.f32.xlu0 %v468
          %v470 = vpop.xlane.xlu0 %469
          %v471 = vmul.f32 %v470, %v464
          %v472 = vadd.f32 %v471, 1e-05
          %v473 = vrsqrt.pop %v472
          %v474 = vmul.f32 %v466, %v473
          %v475 = vld [vmem:[%s3] sm:$0x1]
          %v477 = vlaneseq
          %v478 = vshrl.u32 %v477, 7
          %v479 = vsub.s32 0, %v478
          %v480 = vrot.slane %v475, %v479
          %v482 = vmul.f32 %v474, %v480
          %v483 = vld [vmem:[%s4] sm:$0x1]
          %v485 = vlaneseq
          %v486 = vshrl.u32 %v485, 7
          %v487 = vsub.s32 0, %v486
          %v488 = vrot.slane %v483, %v487
          %v490 = vadd.f32 %v482, %v488
          %491 = vst.msk [vmem:[#allocation2] sm:$0xff] %vm382, %v490
        $region64: #{tpu_custom_call.1} parent=47 // pred_fallthru
          _
        %v492 = vld [vmem:[#allocation8] sm:$0xff]
        %v493 = vld [vmem:[#allocation8 + $0x8] sm:$0xff]
        %v494 = vld [vmem:[#allocation8 + $0x10] sm:$0xff]
        %v495 = vld [vmem:[#allocation8 + $0x18] sm:$0xff]
        %v496 = vld [vmem:[#allocation8 + $0x20] sm:$0xff]
        %v497 = vld [vmem:[#allocation8 + $0x28] sm:$0xff]
        %v498 = vld [vmem:[#allocation8 + $0x30] sm:$0xff]
        %v499 = vld [vmem:[#allocation8 + $0x38] sm:$0xff]
        %v500 = vld [vmem:[#allocation8 + $0x40] sm:$0xff]
        %v501 = vld [vmem:[#allocation8 + $0x48] sm:$0xff]
        %v502 = vld [vmem:[#allocation8 + $0x50] sm:$0xff]
        %v503 = vld [vmem:[#allocation8 + $0x58] sm:$0xff]
        %v504 = vld [vmem:[#allocation8 + $0x60] sm:$0xff]
        %v505 = vld [vmem:[#allocation8 + $0x68] sm:$0xff]
        %v506 = vld [vmem:[#allocation8 + $0x70] sm:$0xff]
        %v507 = vld [vmem:[#allocation8 + $0x78] sm:$0xff]
        %v508 = vld [vmem:[#allocation8 + $0x80] sm:$0xff]
        %v509 = vld [vmem:[#allocation8 + $0x88] sm:$0xff]
        %v510 = vld [vmem:[#allocation8 + $0x90] sm:$0xff]
        %v511 = vld [vmem:[#allocation8 + $0x98] sm:$0xff]
        %v512 = vld [vmem:[#allocation8 + $0xa0] sm:$0xff]
        %v513 = vld [vmem:[#allocation8 + $0xa8] sm:$0xff]
        %v514 = vld [vmem:[#allocation8 + $0xb0] sm:$0xff]
        %v515 = vld [vmem:[#allocation8 + $0xb8] sm:$0xff]
        %v516 = vld [vmem:[#allocation8 + $0xc0] sm:$0xff]
        %v517 = vld [vmem:[#allocation8 + $0xc8] sm:$0xff]
        %v518 = vld [vmem:[#allocation8 + $0xd0] sm:$0xff]
        %v519 = vld [vmem:[#allocation8 + $0xd8] sm:$0xff]
        %v520 = vld [vmem:[#allocation8 + $0xe0] sm:$0xff]
        %v521 = vld [vmem:[#allocation8 + $0xe8] sm:$0xff]
        %v522 = vld [vmem:[#allocation8 + $0xf0] sm:$0xff]
        %v523 = vld [vmem:[#allocation8 + $0xf8] sm:$0xff]
        %v524 = vld [vmem:[#allocation8 + $0x100] sm:$0xff]
        %v525 = vld [vmem:[#allocation8 + $0x108] sm:$0xff]
        %v526 = vld [vmem:[#allocation8 + $0x110] sm:$0xff]
        %v527 = vld [vmem:[#allocation8 + $0x118] sm:$0xff]
        %v528 = vld [vmem:[#allocation8 + $0x120] sm:$0xff]
        %v529 = vld [vmem:[#allocation8 + $0x128] sm:$0xff]
        %v530 = vld [vmem:[#allocation8 + $0x130] sm:$0xff]
        %v531 = vld [vmem:[#allocation8 + $0x138] sm:$0xff]
        %v532 = vld [vmem:[#allocation8 + $0x140] sm:$0xff]
        %v533 = vld [vmem:[#allocation8 + $0x148] sm:$0xff]
        %v534 = vld [vmem:[#allocation8 + $0x150] sm:$0xff]
        %v535 = vld [vmem:[#allocation8 + $0x158] sm:$0xff]
        %v536 = vld [vmem:[#allocation8 + $0x160] sm:$0xff]
        %v537 = vld [vmem:[#allocation8 + $0x168] sm:$0xff]
        %v538 = vld [vmem:[#allocation8 + $0x170] sm:$0xff]
        %v539 = vld [vmem:[#allocation8 + $0x178] sm:$0xff]
        %v540 = vld [vmem:[#allocation8 + $0x180] sm:$0xff]
        %v541 = vld [vmem:[#allocation8 + $0x188] sm:$0xff]
        %v542 = vld [vmem:[#allocation8 + $0x190] sm:$0xff]
        %v543 = vld [vmem:[#allocation8 + $0x198] sm:$0xff]
        %v544 = vld [vmem:[#allocation8 + $0x1a0] sm:$0xff]
        %v545 = vld [vmem:[#allocation8 + $0x1a8] sm:$0xff]
        %v546 = vld [vmem:[#allocation8 + $0x1b0] sm:$0xff]
        %v547 = vld [vmem:[#allocation8 + $0x1b8] sm:$0xff]
        %v548 = vld [vmem:[#allocation8 + $0x1c0] sm:$0xff]
        %v549 = vld [vmem:[#allocation8 + $0x1c8] sm:$0xff]
        %v550 = vld [vmem:[#allocation8 + $0x1d0] sm:$0xff]
        %v551 = vld [vmem:[#allocation8 + $0x1d8] sm:$0xff]
        %v552 = vld [vmem:[#allocation8 + $0x1e0] sm:$0xff]
        %v553 = vld [vmem:[#allocation8 + $0x1e8] sm:$0xff]
        %v554 = vld [vmem:[#allocation8 + $0x1f0] sm:$0xff]
        %v555 = vld [vmem:[#allocation8 + $0x1f8] sm:$0xff]
        %v556 = vld [vmem:[#allocation2] sm:$0xff]
        %v557 = vld [vmem:[%s363] sm:$0xff]
        %v558 = vld [vmem:[%s363 + $0x8] sm:$0xff]
        %v561 = vlaneseq
        %v562 = vshrl.u32 %v561, 7
        %v563 = vsub.s32 0, %v562
        %v564 = vrot.slane %v557, %v563
        %v565 = vlaneseq
        %v566 = vshrl.u32 %v565, 7
        %v567 = vsub.s32 1, %v566
        %v568 = vrot.slane %v557, %v567
        %v569 = vlaneseq
        %v570 = vshrl.u32 %v569, 7
        %v571 = vsub.s32 2, %v570
        %v572 = vrot.slane %v557, %v571
        %v573 = vlaneseq
        %v574 = vshrl.u32 %v573, 7
        %v575 = vsub.s32 3, %v574
        %v576 = vrot.slane %v557, %v575
        %v577 = vlaneseq
        %v578 = vshrl.u32 %v577, 7
        %v579 = vsub.s32 4, %v578
        %v580 = vrot.slane %v557, %v579
        %v581 = vlaneseq
        %v582 = vshrl.u32 %v581, 7
        %v583 = vsub.s32 5, %v582
        %v584 = vrot.slane %v557, %v583
        %v585 = vlaneseq
        %v586 = vshrl.u32 %v585, 7
        %v587 = vsub.s32 6, %v586
        %v588 = vrot.slane %v557, %v587
        %v589 = vlaneseq
        %v590 = vshrl.u32 %v589, 7
        %v591 = vsub.s32 7, %v590
        %v592 = vrot.slane %v557, %v591
        %v593 = vlaneseq
        %v594 = vshrl.u32 %v593, 7
        %v595 = vsub.s32 0, %v594
        %v596 = vrot.slane %v558, %v595
        %v597 = vlaneseq
        %v598 = vshrl.u32 %v597, 7
        %v599 = vsub.s32 1, %v598
        %v600 = vrot.slane %v558, %v599
        %v601 = vlaneseq
        %v602 = vshrl.u32 %v601, 7
        %v603 = vsub.s32 2, %v602
        %v604 = vrot.slane %v558, %v603
        %v605 = vlaneseq
        %v606 = vshrl.u32 %v605, 7
        %v607 = vsub.s32 3, %v606
        %v608 = vrot.slane %v558, %v607
        %v609 = vlaneseq
        %v610 = vshrl.u32 %v609, 7
        %v611 = vsub.s32 4, %v610
        %v612 = vrot.slane %v558, %v611
        %v613 = vlaneseq
        %v614 = vshrl.u32 %v613, 7
        %v615 = vsub.s32 5, %v614
        %v616 = vrot.slane %v558, %v615
        %v617 = vlaneseq
        %v618 = vshrl.u32 %v617, 7
        %v619 = vsub.s32 6, %v618
        %v620 = vrot.slane %v558, %v619
        %v621 = vlaneseq
        %v622 = vshrl.u32 %v621, 7
        %v623 = vsub.s32 7, %v622
        %v624 = vrot.slane %v558, %v623
        %vm641 = vcmask 261120
        %v643 = vsel %vm641, %v556, 0
        %645 = vmatprep.subr.mxu0 %v493
        %646 = vmatpush1.msra.mxu0 %v492
        %647 = vmatprep.subr.mxu0 %v509
        %648 = vmatpush1.msra.mxu0 %v508
        %649 = vmatprep.subr.mxu0 %v525
        %650 = vmatpush1.msra.mxu0 %v524
        %651 = vmatprep.subr.mxu0 %v541
        %652 = vmatpush1.msra.mxu0 %v540
        %653 = vmatprep.subr.mxu0 0.0
        %654 = vmatpush1.msra.mxu0 0.0
        %655 = vmatprep.subr.mxu0 0.0
        %656 = vmatpush1.msra.mxu0 0.0
        %657 = vmatprep.subr.mxu0 0.0
        %658 = vmatpush1.msra.mxu0 0.0
        %659 = vmatprep.subr.mxu0 0.0
        %660 = vmatpush1.msra.mxu0 0.0
        %661 = vmatprep.subr.mxu0 0.0
        %662 = vmatpush1.msra.mxu0 0.0
        %663 = vmatprep.subr.mxu0 0.0
        %664 = vmatpush1.msra.mxu0 0.0
        %665 = vmatprep.subr.mxu0 0.0
        %666 = vmatpush1.msra.mxu0 0.0
        %667 = vmatprep.subr.mxu0 0.0
        %668 = vmatpush1.msra.mxu0 0.0
        %669 = vmatprep.subr.mxu0 0.0
        %670 = vmatpush1.msra.mxu0 0.0
        %671 = vmatprep.subr.mxu0 0.0
        %672 = vmatpush1.msra.mxu0 0.0
        %673 = vmatprep.subr.mxu0 0.0
        %674 = vmatpush1.msra.mxu0 0.0
        %675 = vmatprep.subr.mxu0 0.0
        %676 = vmatpush1.msra.mxu0 0.0
        %677 = vmatprep.subr.mxu0 0.0
        %678 = vmatpush1.msra.mxu0 0.0
        %679 = vmatprep.subr.mxu0 0.0
        %680 = vmatpush1.msra.mxu0 0.0
        %681 = vmatprep.subr.mxu0 0.0
        %682 = vmatpush1.msra.mxu0 0.0
        %683 = vmatprep.subr.mxu0 0.0
        %684 = vmatpush1.msra.mxu0 0.0
        %685 = vmatprep.subr.mxu0 0.0
        %686 = vmatpush1.msra.mxu0 0.0
        %687 = vmatprep.subr.mxu0 0.0
        %688 = vmatpush1.msra.mxu0 0.0
        %689 = vmatprep.subr.mxu0 0.0
        %690 = vmatpush1.msra.mxu0 0.0
        %691 = vmatprep.subr.mxu0 0.0
        %692 = vmatpush1.msra.mxu0 0.0
        %693 = vmatprep.subr.mxu0 0.0
        %694 = vmatpush1.msra.mxu0 0.0
        %695 = vmatprep.subr.mxu0 0.0
        %696 = vmatpush1.msra.mxu0 0.0
        %697 = vmatprep.subr.mxu0 0.0
        %698 = vmatpush1.msra.mxu0 0.0
        %699 = vmatprep.subr.mxu0 0.0
        %700 = vmatpush1.msra.mxu0 0.0
        %701 = vmatprep.subr.mxu0 0.0
        %702 = vmatpush1.msra.mxu0 0.0
        %703 = vmatprep.subr.mxu0 0.0
        %704 = vmatpush1.msra.mxu0 0.0
        %705 = vmatprep.subr.mxu0 0.0
        %706 = vmatpush1.msra.mxu0 0.0
        %707 = vmatprep.subr.mxu0 0.0
        %708 = vmatpush1.msra.mxu0 0.0
        %709 = vmatprep.mubr.f32.mxu0 0.0
        %710 = vmatmul.mubr.f32.gmra.mrb[0].mxu0 %v643
        %v711 = vpop.f32.mrb[0].mxu0
        %v712 = vadd.f32 %v564, %v711
        %v713 = vpop.f32.mrb[0].mxu0
        %v714 = vadd.f32 %v568, %v713
        %715 = vdwg.mxu0
        %716 = vmatprep.subr.mxu0 %v495
        %717 = vmatpush1.msra.mxu0 %v494
        %718 = vmatprep.subr.mxu0 %v511
        %719 = vmatpush1.msra.mxu0 %v510
        %720 = vmatprep.subr.mxu0 %v527
        %721 = vmatpush1.msra.mxu0 %v526
        %722 = vmatprep.subr.mxu0 %v543
        %723 = vmatpush1.msra.mxu0 %v542
        %724 = vmatprep.subr.mxu0 0.0
        %725 = vmatpush1.msra.mxu0 0.0
        %726 = vmatprep.subr.mxu0 0.0
        %727 = vmatpush1.msra.mxu0 0.0
        %728 = vmatprep.subr.mxu0 0.0
        %729 = vmatpush1.msra.mxu0 0.0
        %730 = vmatprep.subr.mxu0 0.0
        %731 = vmatpush1.msra.mxu0 0.0
        %732 = vmatprep.subr.mxu0 0.0
        %733 = vmatpush1.msra.mxu0 0.0
        %734 = vmatprep.subr.mxu0 0.0
        %735 = vmatpush1.msra.mxu0 0.0
        %736 = vmatprep.subr.mxu0 0.0
        %737 = vmatpush1.msra.mxu0 0.0
        %738 = vmatprep.subr.mxu0 0.0
        %739 = vmatpush1.msra.mxu0 0.0
        %740 = vmatprep.subr.mxu0 0.0
        %741 = vmatpush1.msra.mxu0 0.0
        %742 = vmatprep.subr.mxu0 0.0
        %743 = vmatpush1.msra.mxu0 0.0
        %744 = vmatprep.subr.mxu0 0.0
        %745 = vmatpush1.msra.mxu0 0.0
        %746 = vmatprep.subr.mxu0 0.0
        %747 = vmatpush1.msra.mxu0 0.0
        %748 = vmatprep.subr.mxu0 0.0
        %749 = vmatpush1.msra.mxu0 0.0
        %750 = vmatprep.subr.mxu0 0.0
        %751 = vmatpush1.msra.mxu0 0.0
        %752 = vmatprep.subr.mxu0 0.0
        %753 = vmatpush1.msra.mxu0 0.0
        %754 = vmatprep.subr.mxu0 0.0
        %755 = vmatpush1.msra.mxu0 0.0
        %756 = vmatprep.subr.mxu0 0.0
        %757 = vmatpush1.msra.mxu0 0.0
        %758 = vmatprep.subr.mxu0 0.0
        %759 = vmatpush1.msra.mxu0 0.0
        %760 = vmatprep.subr.mxu0 0.0
        %761 = vmatpush1.msra.mxu0 0.0
        %762 = vmatprep.subr.mxu0 0.0
        %763 = vmatpush1.msra.mxu0 0.0
        %764 = vmatprep.subr.mxu0 0.0
        %765 = vmatpush1.msra.mxu0 0.0
        %766 = vmatprep.subr.mxu0 0.0
        %767 = vmatpush1.msra.mxu0 0.0
        %768 = vmatprep.subr.mxu0 0.0
        %769 = vmatpush1.msra.mxu0 0.0
        %770 = vmatprep.subr.mxu0 0.0
        %771 = vmatpush1.msra.mxu0 0.0
        %772 = vmatprep.subr.mxu0 0.0
        %773 = vmatpush1.msra.mxu0 0.0
        %774 = vmatprep.subr.mxu0 0.0
        %775 = vmatpush1.msra.mxu0 0.0
        %776 = vmatprep.subr.mxu0 0.0
        %777 = vmatpush1.msra.mxu0 0.0
        %778 = vmatprep.subr.mxu0 0.0
        %779 = vmatpush1.msra.mxu0 0.0
        %780 = vmatprep.mubr.f32.mxu0 0.0
        %781 = vmatmul.mubr.f32.gmra.mrb[0].mxu0 %v643
        %v782 = vpop.f32.mrb[0].mxu0
        %v783 = vadd.f32 %v572, %v782
        %v784 = vpop.f32.mrb[0].mxu0
        %v785 = vadd.f32 %v576, %v784
        %786 = vdwg.mxu0
        %787 = vmatprep.subr.mxu0 %v497
        %788 = vmatpush1.msra.mxu0 %v496
        %789 = vmatprep.subr.mxu0 %v513
        %790 = vmatpush1.msra.mxu0 %v512
        %791 = vmatprep.subr.mxu0 %v529
        %792 = vmatpush1.msra.mxu0 %v528
        %793 = vmatprep.subr.mxu0 %v545
        %794 = vmatpush1.msra.mxu0 %v544
        %795 = vmatprep.subr.mxu0 0.0
        %796 = vmatpush1.msra.mxu0 0.0
        %797 = vmatprep.subr.mxu0 0.0
        %798 = vmatpush1.msra.mxu0 0.0
        %799 = vmatprep.subr.mxu0 0.0
        %800 = vmatpush1.msra.mxu0 0.0
        %801 = vmatprep.subr.mxu0 0.0
        %802 = vmatpush1.msra.mxu0 0.0
        %803 = vmatprep.subr.mxu0 0.0
        %804 = vmatpush1.msra.mxu0 0.0
        %805 = vmatprep.subr.mxu0 0.0
        %806 = vmatpush1.msra.mxu0 0.0
        %807 = vmatprep.subr.mxu0 0.0
        %808 = vmatpush1.msra.mxu0 0.0
        %809 = vmatprep.subr.mxu0 0.0
        %810 = vmatpush1.msra.mxu0 0.0
        %811 = vmatprep.subr.mxu0 0.0
        %812 = vmatpush1.msra.mxu0 0.0
        %813 = vmatprep.subr.mxu0 0.0
        %814 = vmatpush1.msra.mxu0 0.0
        %815 = vmatprep.subr.mxu0 0.0
        %816 = vmatpush1.msra.mxu0 0.0
        %817 = vmatprep.subr.mxu0 0.0
        %818 = vmatpush1.msra.mxu0 0.0
        %819 = vmatprep.subr.mxu0 0.0
        %820 = vmatpush1.msra.mxu0 0.0
        %821 = vmatprep.subr.mxu0 0.0
        %822 = vmatpush1.msra.mxu0 0.0
        %823 = vmatprep.subr.mxu0 0.0
        %824 = vmatpush1.msra.mxu0 0.0
        %825 = vmatprep.subr.mxu0 0.0
        %826 = vmatpush1.msra.mxu0 0.0
        %827 = vmatprep.subr.mxu0 0.0
        %828 = vmatpush1.msra.mxu0 0.0
        %829 = vmatprep.subr.mxu0 0.0
        %830 = vmatpush1.msra.mxu0 0.0
        %831 = vmatprep.subr.mxu0 0.0
        %832 = vmatpush1.msra.mxu0 0.0
        %833 = vmatprep.subr.mxu0 0.0
        %834 = vmatpush1.msra.mxu0 0.0
        %835 = vmatprep.subr.mxu0 0.0
        %836 = vmatpush1.msra.mxu0 0.0
        %837 = vmatprep.subr.mxu0 0.0
        %838 = vmatpush1.msra.mxu0 0.0
        %839 = vmatprep.subr.mxu0 0.0
        %840 = vmatpush1.msra.mxu0 0.0
        %841 = vmatprep.subr.mxu0 0.0
        %842 = vmatpush1.msra.mxu0 0.0
        %843 = vmatprep.subr.mxu0 0.0
        %844 = vmatpush1.msra.mxu0 0.0
        %845 = vmatprep.subr.mxu0 0.0
        %846 = vmatpush1.msra.mxu0 0.0
        %847 = vmatprep.subr.mxu0 0.0
        %848 = vmatpush1.msra.mxu0 0.0
        %849 = vmatprep.subr.mxu0 0.0
        %850 = vmatpush1.msra.mxu0 0.0
        %851 = vmatprep.mubr.f32.mxu0 0.0
        %852 = vmatmul.mubr.f32.gmra.mrb[0].mxu0 %v643
        %v853 = vpop.f32.mrb[0].mxu0
        %v854 = vadd.f32 %v580, %v853
        %v855 = vpop.f32.mrb[0].mxu0
        %v856 = vadd.f32 %v584, %v855
        %857 = vdwg.mxu0
        %858 = vmatprep.subr.mxu0 %v499
        %859 = vmatpush1.msra.mxu0 %v498
        %860 = vmatprep.subr.mxu0 %v515
        %861 = vmatpush1.msra.mxu0 %v514
        %862 = vmatprep.subr.mxu0 %v531
        %863 = vmatpush1.msra.mxu0 %v530
        %864 = vmatprep.subr.mxu0 %v547
        %865 = vmatpush1.msra.mxu0 %v546
        %866 = vmatprep.subr.mxu0 0.0
        %867 = vmatpush1.msra.mxu0 0.0
        %868 = vmatprep.subr.mxu0 0.0
        %869 = vmatpush1.msra.mxu0 0.0
        %870 = vmatprep.subr.mxu0 0.0
        %871 = vmatpush1.msra.mxu0 0.0
        %872 = vmatprep.subr.mxu0 0.0
        %873 = vmatpush1.msra.mxu0 0.0
        %874 = vmatprep.subr.mxu0 0.0
        %875 = vmatpush1.msra.mxu0 0.0
        %876 = vmatprep.subr.mxu0 0.0
        %877 = vmatpush1.msra.mxu0 0.0
        %878 = vmatprep.subr.mxu0 0.0
        %879 = vmatpush1.msra.mxu0 0.0
        %880 = vmatprep.subr.mxu0 0.0
        %881 = vmatpush1.msra.mxu0 0.0
        %882 = vmatprep.subr.mxu0 0.0
        %883 = vmatpush1.msra.mxu0 0.0
        %884 = vmatprep.subr.mxu0 0.0
        %885 = vmatpush1.msra.mxu0 0.0
        %886 = vmatprep.subr.mxu0 0.0
        %887 = vmatpush1.msra.mxu0 0.0
        %888 = vmatprep.subr.mxu0 0.0
        %889 = vmatpush1.msra.mxu0 0.0
        %890 = vmatprep.subr.mxu0 0.0
        %891 = vmatpush1.msra.mxu0 0.0
        %892 = vmatprep.subr.mxu0 0.0
        %893 = vmatpush1.msra.mxu0 0.0
        %894 = vmatprep.subr.mxu0 0.0
        %895 = vmatpush1.msra.mxu0 0.0
        %896 = vmatprep.subr.mxu0 0.0
        %897 = vmatpush1.msra.mxu0 0.0
        %898 = vmatprep.subr.mxu0 0.0
        %899 = vmatpush1.msra.mxu0 0.0
        %900 = vmatprep.subr.mxu0 0.0
        %901 = vmatpush1.msra.mxu0 0.0
        %902 = vmatprep.subr.mxu0 0.0
        %903 = vmatpush1.msra.mxu0 0.0
        %904 = vmatprep.subr.mxu0 0.0
        %905 = vmatpush1.msra.mxu0 0.0
        %906 = vmatprep.subr.mxu0 0.0
        %907 = vmatpush1.msra.mxu0 0.0
        %908 = vmatprep.subr.mxu0 0.0
        %909 = vmatpush1.msra.mxu0 0.0
        %910 = vmatprep.subr.mxu0 0.0
        %911 = vmatpush1.msra.mxu0 0.0
        %912 = vmatprep.subr.mxu0 0.0
        %913 = vmatpush1.msra.mxu0 0.0
        %914 = vmatprep.subr.mxu0 0.0
        %915 = vmatpush1.msra.mxu0 0.0
        %916 = vmatprep.subr.mxu0 0.0
        %917 = vmatpush1.msra.mxu0 0.0
        %918 = vmatprep.subr.mxu0 0.0
        %919 = vmatpush1.msra.mxu0 0.0
        %920 = vmatprep.subr.mxu0 0.0
        %921 = vmatpush1.msra.mxu0 0.0
        %922 = vmatprep.mubr.f32.mxu0 0.0
        %923 = vmatmul.mubr.f32.gmra.mrb[0].mxu0 %v643
        %v924 = vpop.f32.mrb[0].mxu0
        %v925 = vadd.f32 %v588, %v924
        %v926 = vpop.f32.mrb[0].mxu0
        %v927 = vadd.f32 %v592, %v926
        %928 = vdwg.mxu0
        %929 = vmatprep.subr.mxu0 %v501
        %930 = vmatpush1.msra.mxu0 %v500
        %931 = vmatprep.subr.mxu0 %v517
        %932 = vmatpush1.msra.mxu0 %v516
        %933 = vmatprep.subr.mxu0 %v533
        %934 = vmatpush1.msra.mxu0 %v532
        %935 = vmatprep.subr.mxu0 %v549
        %936 = vmatpush1.msra.mxu0 %v548
        %937 = vmatprep.subr.mxu0 0.0
        %938 = vmatpush1.msra.mxu0 0.0
        %939 = vmatprep.subr.mxu0 0.0
        %940 = vmatpush1.msra.mxu0 0.0
        %941 = vmatprep.subr.mxu0 0.0
        %942 = vmatpush1.msra.mxu0 0.0
        %943 = vmatprep.subr.mxu0 0.0
        %944 = vmatpush1.msra.mxu0 0.0
        %945 = vmatprep.subr.mxu0 0.0
        %946 = vmatpush1.msra.mxu0 0.0
        %947 = vmatprep.subr.mxu0 0.0
        %948 = vmatpush1.msra.mxu0 0.0
        %949 = vmatprep.subr.mxu0 0.0
        %950 = vmatpush1.msra.mxu0 0.0
        %951 = vmatprep.subr.mxu0 0.0
        %952 = vmatpush1.msra.mxu0 0.0
        %953 = vmatprep.subr.mxu0 0.0
        %954 = vmatpush1.msra.mxu0 0.0
        %955 = vmatprep.subr.mxu0 0.0
        %956 = vmatpush1.msra.mxu0 0.0
        %957 = vmatprep.subr.mxu0 0.0
        %958 = vmatpush1.msra.mxu0 0.0
        %959 = vmatprep.subr.mxu0 0.0
        %960 = vmatpush1.msra.mxu0 0.0
        %961 = vmatprep.subr.mxu0 0.0
        %962 = vmatpush1.msra.mxu0 0.0
        %963 = vmatprep.subr.mxu0 0.0
        %964 = vmatpush1.msra.mxu0 0.0
        %965 = vmatprep.subr.mxu0 0.0
        %966 = vmatpush1.msra.mxu0 0.0
        %967 = vmatprep.subr.mxu0 0.0
        %968 = vmatpush1.msra.mxu0 0.0
        %969 = vmatprep.subr.mxu0 0.0
        %970 = vmatpush1.msra.mxu0 0.0
        %971 = vmatprep.subr.mxu0 0.0
        %972 = vmatpush1.msra.mxu0 0.0
        %973 = vmatprep.subr.mxu0 0.0
        %974 = vmatpush1.msra.mxu0 0.0
        %975 = vmatprep.subr.mxu0 0.0
        %976 = vmatpush1.msra.mxu0 0.0
        %977 = vmatprep.subr.mxu0 0.0
        %978 = vmatpush1.msra.mxu0 0.0
        %979 = vmatprep.subr.mxu0 0.0
        %980 = vmatpush1.msra.mxu0 0.0
        %981 = vmatprep.subr.mxu0 0.0
        %982 = vmatpush1.msra.mxu0 0.0
        %983 = vmatprep.subr.mxu0 0.0
        %984 = vmatpush1.msra.mxu0 0.0
        %985 = vmatprep.subr.mxu0 0.0
        %986 = vmatpush1.msra.mxu0 0.0
        %987 = vmatprep.subr.mxu0 0.0
        %988 = vmatpush1.msra.mxu0 0.0
        %989 = vmatprep.subr.mxu0 0.0
        %990 = vmatpush1.msra.mxu0 0.0
        %991 = vmatprep.subr.mxu0 0.0
        %992 = vmatpush1.msra.mxu0 0.0
        %993 = vmatprep.mubr.f32.mxu0 0.0
        %994 = vmatmul.mubr.f32.gmra.mrb[0].mxu0 %v643
        %v995 = vpop.f32.mrb[0].mxu0
        %v996 = vadd.f32 %v596, %v995
        %v997 = vpop.f32.mrb[0].mxu0
        %v998 = vadd.f32 %v600, %v997
        %999 = vdwg.mxu0
        %1000 = vmatprep.subr.mxu0 %v503
        %1001 = vmatpush1.msra.mxu0 %v502
        %1002 = vmatprep.subr.mxu0 %v519
        %1003 = vmatpush1.msra.mxu0 %v518
        %1004 = vmatprep.subr.mxu0 %v535
        %1005 = vmatpush1.msra.mxu0 %v534
        %1006 = vmatprep.subr.mxu0 %v551
        %1007 = vmatpush1.msra.mxu0 %v550
        %1008 = vmatprep.subr.mxu0 0.0
        %1009 = vmatpush1.msra.mxu0 0.0
        %1010 = vmatprep.subr.mxu0 0.0
        %1011 = vmatpush1.msra.mxu0 0.0
        %1012 = vmatprep.subr.mxu0 0.0
        %1013 = vmatpush1.msra.mxu0 0.0
        %1014 = vmatprep.subr.mxu0 0.0
        %1015 = vmatpush1.msra.mxu0 0.0
        %1016 = vmatprep.subr.mxu0 0.0
        %1017 = vmatpush1.msra.mxu0 0.0
        %1018 = vmatprep.subr.mxu0 0.0
        %1019 = vmatpush1.msra.mxu0 0.0
        %1020 = vmatprep.subr.mxu0 0.0
        %1021 = vmatpush1.msra.mxu0 0.0
        %1022 = vmatprep.subr.mxu0 0.0
        %1023 = vmatpush1.msra.mxu0 0.0
        %1024 = vmatprep.subr.mxu0 0.0
        %1025 = vmatpush1.msra.mxu0 0.0
        %1026 = vmatprep.subr.mxu0 0.0
        %1027 = vmatpush1.msra.mxu0 0.0
        %1028 = vmatprep.subr.mxu0 0.0
        %1029 = vmatpush1.msra.mxu0 0.0
        %1030 = vmatprep.subr.mxu0 0.0
        %1031 = vmatpush1.msra.mxu0 0.0
        %1032 = vmatprep.subr.mxu0 0.0
        %1033 = vmatpush1.msra.mxu0 0.0
        %1034 = vmatprep.subr.mxu0 0.0
        %1035 = vmatpush1.msra.mxu0 0.0
        %1036 = vmatprep.subr.mxu0 0.0
        %1037 = vmatpush1.msra.mxu0 0.0
        %1038 = vmatprep.subr.mxu0 0.0
        %1039 = vmatpush1.msra.mxu0 0.0
        %1040 = vmatprep.subr.mxu0 0.0
        %1041 = vmatpush1.msra.mxu0 0.0
        %1042 = vmatprep.subr.mxu0 0.0
        %1043 = vmatpush1.msra.mxu0 0.0
        %1044 = vmatprep.subr.mxu0 0.0
        %1045 = vmatpush1.msra.mxu0 0.0
        %1046 = vmatprep.subr.mxu0 0.0
        %1047 = vmatpush1.msra.mxu0 0.0
        %1048 = vmatprep.subr.mxu0 0.0
        %1049 = vmatpush1.msra.mxu0 0.0
        %1050 = vmatprep.subr.mxu0 0.0
        %1051 = vmatpush1.msra.mxu0 0.0
        %1052 = vmatprep.subr.mxu0 0.0
        %1053 = vmatpush1.msra.mxu0 0.0
        %1054 = vmatprep.subr.mxu0 0.0
        %1055 = vmatpush1.msra.mxu0 0.0
        %1056 = vmatprep.subr.mxu0 0.0
        %1057 = vmatpush1.msra.mxu0 0.0
        %1058 = vmatprep.subr.mxu0 0.0
        %1059 = vmatpush1.msra.mxu0 0.0
        %1060 = vmatprep.subr.mxu0 0.0
        %1061 = vmatpush1.msra.mxu0 0.0
        %1062 = vmatprep.subr.mxu0 0.0
        %1063 = vmatpush1.msra.mxu0 0.0
        %1064 = vmatprep.mubr.f32.mxu0 0.0
        %1065 = vmatmul.mubr.f32.gmra.mrb[0].mxu0 %v643
        %v1066 = vpop.f32.mrb[0].mxu0
        %v1067 = vadd.f32 %v604, %v1066
        %v1068 = vpop.f32.mrb[0].mxu0
        %v1069 = vadd.f32 %v608, %v1068
        %1070 = vdwg.mxu0
        %1071 = vmatprep.subr.mxu0 %v505
        %1072 = vmatpush1.msra.mxu0 %v504
        %1073 = vmatprep.subr.mxu0 %v521
        %1074 = vmatpush1.msra.mxu0 %v520
        %1075 = vmatprep.subr.mxu0 %v537
        %1076 = vmatpush1.msra.mxu0 %v536
        %1077 = vmatprep.subr.mxu0 %v553
        %1078 = vmatpush1.msra.mxu0 %v552
        %1079 = vmatprep.subr.mxu0 0.0
        %1080 = vmatpush1.msra.mxu0 0.0
        %1081 = vmatprep.subr.mxu0 0.0
        %1082 = vmatpush1.msra.mxu0 0.0
        %1083 = vmatprep.subr.mxu0 0.0
        %1084 = vmatpush1.msra.mxu0 0.0
        %1085 = vmatprep.subr.mxu0 0.0
        %1086 = vmatpush1.msra.mxu0 0.0
        %1087 = vmatprep.subr.mxu0 0.0
        %1088 = vmatpush1.msra.mxu0 0.0
        %1089 = vmatprep.subr.mxu0 0.0
        %1090 = vmatpush1.msra.mxu0 0.0
        %1091 = vmatprep.subr.mxu0 0.0
        %1092 = vmatpush1.msra.mxu0 0.0
        %1093 = vmatprep.subr.mxu0 0.0
        %1094 = vmatpush1.msra.mxu0 0.0
        %1095 = vmatprep.subr.mxu0 0.0
        %1096 = vmatpush1.msra.mxu0 0.0
        %1097 = vmatprep.subr.mxu0 0.0
        %1098 = vmatpush1.msra.mxu0 0.0
        %1099 = vmatprep.subr.mxu0 0.0
        %1100 = vmatpush1.msra.mxu0 0.0
        %1101 = vmatprep.subr.mxu0 0.0
        %1102 = vmatpush1.msra.mxu0 0.0
        %1103 = vmatprep.subr.mxu0 0.0
        %1104 = vmatpush1.msra.mxu0 0.0
        %1105 = vmatprep.subr.mxu0 0.0
        %1106 = vmatpush1.msra.mxu0 0.0
        %1107 = vmatprep.subr.mxu0 0.0
        %1108 = vmatpush1.msra.mxu0 0.0
        %1109 = vmatprep.subr.mxu0 0.0
        %1110 = vmatpush1.msra.mxu0 0.0
        %1111 = vmatprep.subr.mxu0 0.0
        %1112 = vmatpush1.msra.mxu0 0.0
        %1113 = vmatprep.subr.mxu0 0.0
        %1114 = vmatpush1.msra.mxu0 0.0
        %1115 = vmatprep.subr.mxu0 0.0
        %1116 = vmatpush1.msra.mxu0 0.0
        %1117 = vmatprep.subr.mxu0 0.0
        %1118 = vmatpush1.msra.mxu0 0.0
        %1119 = vmatprep.subr.mxu0 0.0
        %1120 = vmatpush1.msra.mxu0 0.0
        %1121 = vmatprep.subr.mxu0 0.0
        %1122 = vmatpush1.msra.mxu0 0.0
        %1123 = vmatprep.subr.mxu0 0.0
        %1124 = vmatpush1.msra.mxu0 0.0
        %1125 = vmatprep.subr.mxu0 0.0
        %1126 = vmatpush1.msra.mxu0 0.0
        %1127 = vmatprep.subr.mxu0 0.0
        %1128 = vmatpush1.msra.mxu0 0.0
        %1129 = vmatprep.subr.mxu0 0.0
        %1130 = vmatpush1.msra.mxu0 0.0
        %1131 = vmatprep.subr.mxu0 0.0
        %1132 = vmatpush1.msra.mxu0 0.0
        %1133 = vmatprep.subr.mxu0 0.0
        %1134 = vmatpush1.msra.mxu0 0.0
        %1135 = vmatprep.mubr.f32.mxu0 0.0
        %1136 = vmatmul.mubr.f32.gmra.mrb[0].mxu0 %v643
        %v1137 = vpop.f32.mrb[0].mxu0
        %v1138 = vadd.f32 %v612, %v1137
        %v1139 = vpop.f32.mrb[0].mxu0
        %v1140 = vadd.f32 %v616, %v1139
        %1141 = vdwg.mxu0
        %1142 = vmatprep.subr.mxu0 %v507
        %1143 = vmatpush1.msra.mxu0 %v506
        %1144 = vmatprep.subr.mxu0 %v523
        %1145 = vmatpush1.msra.mxu0 %v522
        %1146 = vmatprep.subr.mxu0 %v539
        %1147 = vmatpush1.msra.mxu0 %v538
        %1148 = vmatprep.subr.mxu0 %v555
        %1149 = vmatpush1.msra.mxu0 %v554
        %1150 = vmatprep.subr.mxu0 0.0
        %1151 = vmatpush1.msra.mxu0 0.0
        %1152 = vmatprep.subr.mxu0 0.0
        %1153 = vmatpush1.msra.mxu0 0.0
        %1154 = vmatprep.subr.mxu0 0.0
        %1155 = vmatpush1.msra.mxu0 0.0
        %1156 = vmatprep.subr.mxu0 0.0
        %1157 = vmatpush1.msra.mxu0 0.0
        %1158 = vmatprep.subr.mxu0 0.0
        %1159 = vmatpush1.msra.mxu0 0.0
        %1160 = vmatprep.subr.mxu0 0.0
        %1161 = vmatpush1.msra.mxu0 0.0
        %1162 = vmatprep.subr.mxu0 0.0
        %1163 = vmatpush1.msra.mxu0 0.0
        %1164 = vmatprep.subr.mxu0 0.0
        %1165 = vmatpush1.msra.mxu0 0.0
        %1166 = vmatprep.subr.mxu0 0.0
        %1167 = vmatpush1.msra.mxu0 0.0
        %1168 = vmatprep.subr.mxu0 0.0
        %1169 = vmatpush1.msra.mxu0 0.0
        %1170 = vmatprep.subr.mxu0 0.0
        %1171 = vmatpush1.msra.mxu0 0.0
        %1172 = vmatprep.subr.mxu0 0.0
        %1173 = vmatpush1.msra.mxu0 0.0
        %1174 = vmatprep.subr.mxu0 0.0
        %1175 = vmatpush1.msra.mxu0 0.0
        %1176 = vmatprep.subr.mxu0 0.0
        %1177 = vmatpush1.msra.mxu0 0.0
        %1178 = vmatprep.subr.mxu0 0.0
        %1179 = vmatpush1.msra.mxu0 0.0
        %1180 = vmatprep.subr.mxu0 0.0
        %1181 = vmatpush1.msra.mxu0 0.0
        %1182 = vmatprep.subr.mxu0 0.0
        %1183 = vmatpush1.msra.mxu0 0.0
        %1184 = vmatprep.subr.mxu0 0.0
        %1185 = vmatpush1.msra.mxu0 0.0
        %1186 = vmatprep.subr.mxu0 0.0
        %1187 = vmatpush1.msra.mxu0 0.0
        %1188 = vmatprep.subr.mxu0 0.0
        %1189 = vmatpush1.msra.mxu0 0.0
        %1190 = vmatprep.subr.mxu0 0.0
        %1191 = vmatpush1.msra.mxu0 0.0
        %1192 = vmatprep.subr.mxu0 0.0
        %1193 = vmatpush1.msra.mxu0 0.0
        %1194 = vmatprep.subr.mxu0 0.0
        %1195 = vmatpush1.msra.mxu0 0.0
        %1196 = vmatprep.subr.mxu0 0.0
        %1197 = vmatpush1.msra.mxu0 0.0
        %1198 = vmatprep.subr.mxu0 0.0
        %1199 = vmatpush1.msra.mxu0 0.0
        %1200 = vmatprep.subr.mxu0 0.0
        %1201 = vmatpush1.msra.mxu0 0.0
        %1202 = vmatprep.subr.mxu0 0.0
        %1203 = vmatpush1.msra.mxu0 0.0
        %1204 = vmatprep.subr.mxu0 0.0
        %1205 = vmatpush1.msra.mxu0 0.0
        %1206 = vmatprep.mubr.f32.mxu0 0.0
        %1207 = vmatmul.mubr.f32.gmra.mrb[0].mxu0 %v643
        %v1208 = vpop.f32.mrb[0].mxu0
        %v1209 = vadd.f32 %v620, %v1208
        %v1210 = vpop.f32.mrb[0].mxu0
        %v1211 = vadd.f32 %v624, %v1210
        %1212 = vdwg.mxu0
        %1213 = vst [vmem:[%s358] sm:$0xff] %v712
        %1214 = vst [vmem:[%s358 + $0x8] sm:$0xff] %v714
        %1215 = vst [vmem:[%s358 + $0x10] sm:$0xff] %v783
        %1216 = vst [vmem:[%s358 + $0x18] sm:$0xff] %v785
        %1217 = vst [vmem:[%s358 + $0x20] sm:$0xff] %v854
        %1218 = vst [vmem:[%s358 + $0x28] sm:$0xff] %v856
        %1219 = vst [vmem:[%s358 + $0x30] sm:$0xff] %v925
        %1220 = vst [vmem:[%s358 + $0x38] sm:$0xff] %v927
        %1221 = vst [vmem:[%s358 + $0x40] sm:$0xff] %v996
        %1222 = vst [vmem:[%s358 + $0x48] sm:$0xff] %v998
        %1223 = vst [vmem:[%s358 + $0x50] sm:$0xff] %v1067
        %1224 = vst [vmem:[%s358 + $0x58] sm:$0xff] %v1069
        %1225 = vst [vmem:[%s358 + $0x60] sm:$0xff] %v1138
        %1226 = vst [vmem:[%s358 + $0x68] sm:$0xff] %v1140
        %1227 = vst [vmem:[%s358 + $0x70] sm:$0xff] %v1209
        %1228 = vst [vmem:[%s358 + $0x78] sm:$0xff] %v1211
        %s1229 = sand.u32 %s209, 1
        %s1230 = scalar_lea.sflag [#allocation5], %s1229
        %s1231 = sand.u32 %s209, 1
        %s1232 = smul.addr %s1231, 128
        %s1233 = scalar_lea.vmem [#allocation9], %s1232
        // Predicated region
        $region65: #{tpu_custom_call.1} parent=47 // pred_check
          %p1234 = pneg %p219
        $region66: #{tpu_custom_call.1} parent=47 // pred_check_branch
          %1236 = sbr.rel (%p1234) target = $region68
        $region67: #{tpu_custom_call.1} parent=47 // pred_region
          %s1237 = smul.u32 16, %s30
          %s1239 = ssub.s32 2048, 2048
          %1240 = vsyncadd %s1230, %s1239
          %s1241 = smul.addr %s29, 16
          %s1242 = sadd.s32 %s1237, %s1241
          %s1243 = smul.addr %s1242, 128
          %s1244 = scalar_lea.hbm %s7, %s1243
          %s1246 = sshll.u32 %s1233, 4
          %s1247 = int_to_ptr.vmem [resolvable:$true] %s1246
          %1249 = dma.vmem_to_hbm [thread:$0]  %s1247, 2048, %s1244, %s1230
        $region68: #{tpu_custom_call.1} parent=47 // pred_fallthru
          _
      $region48: #{tpu_custom_call.1} parent=5 // pred_fallthru
        _
      %p1250 = scmp.le.s32.totalorder 2, %s20
      // Predicated region
      $region69: #{tpu_custom_call.1} parent=5 // pred_check
        %p1251 = pneg %p1250
      $region70: #{tpu_custom_call.1} parent=5 // pred_check_branch
        %1253 = sbr.rel (%p1251) target = $region72
      $region71: #{tpu_custom_call.1} parent=5 // pred_region
        %s1254 = ssub.s32 %s20, 2
        // Predicated region
        $region73: #{tpu_custom_call.1} parent=71 // pred_check
          %p1255 = pneg %p225
        $region74: #{tpu_custom_call.1} parent=71 // pred_check_branch
          %1257 = sbr.rel (%p1255) target = $region76
        $region75: #{tpu_custom_call.1} parent=71 // pred_region
          %s1258 = sand.u32 %s210, 1
          %s1259 = scalar_lea.sflag [#allocation5], %s1258
          %s1260 = sand.u32 %s210, 1
          %s1261 = smul.addr %s1260, 128
          %s1262 = scalar_lea.vmem [#allocation9], %s1261
          %1263 = dma.done %s1259, 2048
        $region76: #{tpu_custom_call.1} parent=71 // pred_fallthru
          _
      $region72: #{tpu_custom_call.1} parent=5 // pred_fallthru
        _
    $region6: #{tpu_custom_call.1} parent=1 // loop_footer
      %s24 = sadd.s32 1, %s20
    $region7: #{tpu_custom_call.1} parent=1 // loop_footer_branch
      %19 = sbr.rel target = $region3
    $region8: #{tpu_custom_call.1} parent=1 // loop_exit
      _
    %1264 = vsyncpa [#allocation4], 1
    %s1265 = scalar_lea.sflag [#allocation4], 1
    %1266 = vsyncpa %s1265, 1
    %1267 = vsyncpa [#allocation7], 1
    %1268 = vsyncpa [#allocation5], 1
    %s1269 = scalar_lea.sflag [#allocation5], 1
    %1270 = vsyncpa %s1269, 1

</llo_original>
